<compile_context>
chip_gen: v7x
topology: tpu7x:2x2x1
jax: 0.10.0
libtpu: 0.0.40
codegen_flags: <defaults>
</compile_context>

<pallas_src>
import functools

import jax
import jax.numpy as jnp
from jax.experimental import pallas as pl
from jax.experimental.pallas import tpu as pltpu


LANE = 128      # vreg lane width; all feature dims are padded to a multiple of this.
SUBLANE = 8


def _round_up(n, m):
    return ((n + m - 1) // m) * m


def _fused_decoder_kernel(n_hidden, x_ref, *refs):
    """refs = (W1, b1, ..., Wh, bh, Wr, br, out).  Weights pre-transposed [d_in_pad, d_out_pad]."""
    o_ref = refs[-1]
    wb = refs[:-1]
    compute_dtype = wb[0].dtype          # bf16 (default) or f32 parameter storage
    x = x_ref[...].astype(compute_dtype)
    for li in range(n_hidden):
        w = wb[2 * li][...]
        b = wb[2 * li + 1][...]
        # MXU matmul, f32 accumulation (inputs may be bf16).
        y = jnp.dot(x, w, preferred_element_type=jnp.float32) + b.astype(jnp.float32)
        # F.normalize(y, p=2, dim=1) == y / max(||y||, 1e-12)
        #                            == y * rsqrt(max(||y||^2, 1e-24))
        # Padded feature columns are exactly zero, so they do not change the norm.
        # Elementwise math stays in f32 (v5e VPU/EUP have no bf16 path).
        sq = jnp.sum(y * y, axis=1, keepdims=True)
        y = y * jax.lax.rsqrt(jnp.maximum(sq, 1e-24))
        # ReLU; F.dropout(..., training=False) is the identity (eval mode).
        # TODO(synk): training-mode dropout (pltpu.prng_* mask) not implemented.
        x = jnp.maximum(y, 0.0).astype(compute_dtype)
    wr = wb[2 * n_hidden][...]
    br = wb[2 * n_hidden + 1][...]
    out = jnp.dot(x, wr, preferred_element_type=jnp.float32) + br.astype(jnp.float32)
    o_ref[...] = out.astype(o_ref.dtype)   # lane-dense (padded) store, sliced in wrapper


def init_decoder_y_params(key, z_dim, h_dims, x_dim):
    """Deterministic init mimicking nn.Linear default (uniform +-1/sqrt(fan_in)).

    Weights are stored already transposed: W_t has shape [in, out]. These are the
    "true" (unpadded, f32) parameters, also used by the pure-JAX reference.
    """
    neurons = [z_dim, *h_dims]
    params = {"hidden": [], "recon": None}
    for i in range(1, len(neurons)):
        fan_in, fan_out = neurons[i - 1], neurons[i]
        key, kw, kb = jax.random.split(key, 3)
        bound = 1.0 / jnp.sqrt(fan_in)
        w_t = jax.random.uniform(kw, (fan_in, fan_out), jnp.float32, -bound, bound)
        b = jax.random.uniform(kb, (fan_out,), jnp.float32, -bound, bound)
        params["hidden"].append((w_t, b))
    fan_in = h_dims[-1]
    key, kw, kb = jax.random.split(key, 3)
    bound = 1.0 / jnp.sqrt(fan_in)
    w_t = jax.random.uniform(kw, (fan_in, x_dim), jnp.float32, -bound, bound)
    b = jax.random.uniform(kb, (x_dim,), jnp.float32, -bound, bound)
    params["recon"] = (w_t, b)
    return params


def prepare_decoder_y_params(params, param_dtype=jnp.bfloat16):
    """Zero-pad ALL feature dims (input, hidden, output) up to multiples of 128.

    Full-lane-width blocks -> dense vld/vst and dense DMA everywhere (the padded
    reconstruction output in particular avoids masked vst.msk partial stores).
    Padded weight rows/columns and bias entries are zero, so matmuls and the
    per-row L2 norm are unchanged.  Parameters are stored in `param_dtype`
    (bf16 by default, per v6e/v7x guidance: the kernel is DMA-bound, not
    MXU-bound; keep 256-padding OFF — hidden dims are tiny, MXU is not the
    binding resource).  Returns a flat tuple (W1, b1, ..., Wh, bh, Wr, br).
    """
    flat = []
    prev_pad = None  # padded in-dim expected by the next layer
    for (w_t, b) in params["hidden"]:
        d_in, d_out = w_t.shape
        in_pad = _round_up(d_in, LANE) if prev_pad is None else prev_pad
        out_pad = _round_up(d_out, LANE)
        w_p = jnp.zeros((in_pad, out_pad), jnp.float32).at[:d_in, :d_out].set(w_t)
        b_p = jnp.zeros((1, out_pad), jnp.float32).at[0, :d_out].set(b)
        flat += [w_p.astype(param_dtype), b_p.astype(param_dtype)]
        prev_pad = out_pad
    w_t, b = params["recon"]
    d_in, d_out = w_t.shape
    in_pad = _round_up(d_in, LANE) if prev_pad is None else prev_pad
    out_pad = _round_up(d_out, LANE)   # lane-dense output dim
    w_p = jnp.zeros((in_pad, out_pad), jnp.float32).at[:d_in, :d_out].set(w_t)
    b_p = jnp.zeros((1, out_pad), jnp.float32).at[0, :d_out].set(b)
    flat += [w_p.astype(param_dtype), b_p.astype(param_dtype)]
    return tuple(flat)


@functools.partial(jax.jit, static_argnames=("x_dim", "tile_n"))
def decoder_y_forward(flat_params, x, *, x_dim, tile_n=512):
    n, z_dim = x.shape
    n_hidden = len(flat_params) // 2 - 1
    z_pad = flat_params[0].shape[0]        # padded input feature dim (mult of 128)
    out_pad = flat_params[-1].shape[-1]    # padded output feature dim (mult of 128)
    compute_dtype = flat_params[0].dtype
    tile_n = _round_up(tile_n, SUBLANE)

    # Lane-pad the input features so the x-tile DMA and the vlds feeding the
    # first matmul are full-lane-width, then cast to the storage dtype (halves
    # activation DMA bytes when bf16).
    if z_pad != z_dim:
        x = jnp.pad(x, ((0, 0), (0, z_pad - z_dim)))
    x = x.astype(compute_dtype)

    kernel = functools.partial(_fused_decoder_kernel, n_hidden)

    if n <= tile_n:
        # Small batch: single invocation, no grid, everything resident in VMEM.
        # Worst case VMEM here is tile_n x 128 activations + tiny weights: far
        # under every generation's scoped-VMEM default.
        vmem = pl.BlockSpec(memory_space=pltpu.MemorySpace.VMEM)
        out = pl.pallas_call(
            kernel,
            out_shape=jax.ShapeDtypeStruct((n, out_pad), jnp.float32),
            in_specs=[vmem] * (1 + len(flat_params)),
            out_specs=vmem,
        )(x, *flat_params)
        return out[:, :x_dim]

    # Large batch: pad rows to a multiple of tile_n (ragged N is handled here in
    # the wrapper, so the tiled/pipelined path is used for arbitrary N instead
    # of an all-resident whole-batch fallback).  n > tile_n guarantees the grid
    # has >= 2 steps, so both v7x TensorCores get work on the "parallel" axis.
    n_pad = _round_up(n, tile_n)
    if n_pad != n:
        x = jnp.pad(x, ((0, n_pad - n), (0, 0)))   # zero rows: norm-safe, sliced off below
    grid = n_pad // tile_n

    in_specs = [pl.BlockSpec((tile_n, z_pad), lambda i: (i, 0))]
    for p in flat_params:
        # Constant index_map: weights/biases stay resident across grid steps.
        # (pl.Buffered(1) would shave the duplicate pipeline copy, ~0.3 MiB; not
        #  applied to keep the spec maximally portable.)
        in_specs.append(pl.BlockSpec(p.shape, lambda i: (0, 0)))
    out = pl.pallas_call(
        kernel,
        out_shape=jax.ShapeDtypeStruct((n_pad, out_pad), jnp.float32),
        grid=(grid,),
        in_specs=in_specs,
        out_specs=pl.BlockSpec((tile_n, out_pad), lambda i: (i, 0)),
        compiler_params=pltpu.CompilerParams(
            dimension_semantics=("parallel",)),
    )(x, *flat_params)
    return out[:n, :x_dim]


def _reference_forward(params, x):
    # Pure-JAX f32 reference matching the PyTorch module (unpadded params).
    for (w_t, b) in params["hidden"]:
        x = x @ w_t + b
        norm = jnp.maximum(jnp.linalg.norm(x, axis=1, keepdims=True), 1e-12)
        x = jnp.maximum(x / norm, 0.0)
    w_t, b = params["recon"]
    return x @ w_t + b


if __name__ == "__main__":
    # Small shapes consistent with the module: batch N=8, z_dim=32, h_dims=[64, 32], x_dim=16
    N, Z_DIM, H_DIMS, X_DIM = 8, 32, [64, 32], 16

    key = jax.random.PRNGKey(0)
    key, kx, kp = jax.random.split(key, 3)
    x = jax.random.normal(kx, (N, Z_DIM), jnp.float32)
    params = init_decoder_y_params(kp, Z_DIM, H_DIMS, X_DIM)

    # --- f32 parameter storage: exact-semantics check vs the pure-JAX reference.
    flat_f32 = prepare_decoder_y_params(params, param_dtype=jnp.float32)
    out = jax.block_until_ready(decoder_y_forward(flat_f32, x, x_dim=X_DIM))
    ref = _reference_forward(params, x)
    assert out.shape == (N, X_DIM)
    assert jnp.allclose(out, ref, atol=1e-5, rtol=1e-4), float(jnp.max(jnp.abs(out - ref)))

    # --- bf16 parameter/activation storage (default; halves HBM/VMEM bytes on
    # this DMA-bound kernel) — checked with bf16-appropriate tolerance.
    flat_bf16 = prepare_decoder_y_params(params, param_dtype=jnp.bfloat16)
    out_bf = jax.block_until_ready(decoder_y_forward(flat_bf16, x, x_dim=X_DIM))
    assert out_bf.shape == (N, X_DIM)
    assert jnp.allclose(out_bf, ref, atol=3e-2, rtol=3e-2), float(jnp.max(jnp.abs(out_bf - ref)))

    # --- Row-tiled ("parallel" grid) path with ragged N (not divisible by tile_n):
    # exercises wrapper row-padding, grid >= 2, lane-dense padded output slicing.
    key, kx2 = jax.random.split(key)
    N_BIG = 1337
    x_big = jax.random.normal(kx2, (N_BIG, Z_DIM), jnp.float32)
    out_big = jax.block_until_ready(decoder_y_forward(flat_f32, x_big, x_dim=X_DIM))
    ref_big = _reference_forward(params, x_big)
    assert out_big.shape == (N_BIG, X_DIM)
    assert jnp.allclose(out_big, ref_big, atol=1e-5, rtol=1e-4), float(
        jnp.max(jnp.abs(out_big - ref_big)))

    # bf16 storage on the tiled path too.
    out_big_bf = jax.block_until_ready(decoder_y_forward(flat_bf16, x_big, x_dim=X_DIM))
    assert jnp.allclose(out_big_bf, ref_big, atol=3e-2, rtol=3e-2), float(
        jnp.max(jnp.abs(out_big_bf - ref_big)))

    print("KERNEL_OK")
</pallas_src>

<mosaic_0001>
module attributes {stable_mosaic.version = 11 : i64} {
  func.func @_fused_decoder_kernel(%arg0: memref<8x128xf32, #tpu.memory_space<vmem>>, %arg1: memref<128x128xf32, #tpu.memory_space<vmem>>, %arg2: memref<1x128xf32, #tpu.memory_space<vmem>>, %arg3: memref<128x128xf32, #tpu.memory_space<vmem>>, %arg4: memref<1x128xf32, #tpu.memory_space<vmem>>, %arg5: memref<128x128xf32, #tpu.memory_space<vmem>>, %arg6: memref<1x128xf32, #tpu.memory_space<vmem>>, %arg7: memref<8x128xf32, #tpu.memory_space<vmem>>) attributes {dimension_semantics = [], scalar_prefetch = 0 : i64, scratch_operands = 0 : i64, tpu.core_type = #tpu.core_type<tc>} {
    %c0 = arith.constant 0 : index
    %c0_0 = arith.constant 0 : index
    %0 = vector.load %arg0[%c0, %c0_0] : memref<8x128xf32, #tpu.memory_space<vmem>>, vector<8x128xf32>
    %c0_1 = arith.constant 0 : index
    %c0_2 = arith.constant 0 : index
    %1 = vector.load %arg1[%c0_1, %c0_2] : memref<128x128xf32, #tpu.memory_space<vmem>>, vector<128x128xf32>
    %c0_3 = arith.constant 0 : index
    %c0_4 = arith.constant 0 : index
    %2 = vector.load %arg2[%c0_3, %c0_4] : memref<1x128xf32, #tpu.memory_space<vmem>>, vector<1x128xf32>
    %cst = arith.constant dense<0.000000e+00> : vector<8x128xf32>
    %3 = tpu.matmul %0, %1, %cst {dimension_numbers = #tpu.dot_dimension_numbers<[1], [0], [0], [1], [0, 0, 1, 1], [], []>} : vector<8x128xf32>, vector<128x128xf32>, vector<8x128xf32> -> vector<8x128xf32>
    %4 = vector.broadcast %2 : vector<1x128xf32> to vector<8x128xf32>
    %5 = arith.addf %3, %4 : vector<8x128xf32>
    %6 = arith.mulf %5, %5 : vector<8x128xf32>
    %cst_5 = arith.constant dense<0.000000e+00> : vector<8xf32>
    %7 = vector.multi_reduction <add>, %6, %cst_5 [1] : vector<8x128xf32> to vector<8xf32>
    %8 = vector.shape_cast %7 : vector<8xf32> to vector<8x1xf32>
    %cst_6 = arith.constant 1.000000e-24 : f32
    %9 = vector.broadcast %cst_6 : f32 to vector<8x1xf32>
    %10 = arith.maximumf %8, %9 : vector<8x1xf32>
    %11 = math.rsqrt %10 : vector<8x1xf32>
    %12 = vector.broadcast %11 : vector<8x1xf32> to vector<8x128xf32>
    %13 = arith.mulf %5, %12 : vector<8x128xf32>
    %cst_7 = arith.constant 0.000000e+00 : f32
    %14 = vector.broadcast %cst_7 : f32 to vector<8x128xf32>
    %15 = arith.maximumf %13, %14 : vector<8x128xf32>
    %c0_8 = arith.constant 0 : index
    %c0_9 = arith.constant 0 : index
    %16 = vector.load %arg3[%c0_8, %c0_9] : memref<128x128xf32, #tpu.memory_space<vmem>>, vector<128x128xf32>
    %c0_10 = arith.constant 0 : index
    %c0_11 = arith.constant 0 : index
    %17 = vector.load %arg4[%c0_10, %c0_11] : memref<1x128xf32, #tpu.memory_space<vmem>>, vector<1x128xf32>
    %cst_12 = arith.constant dense<0.000000e+00> : vector<8x128xf32>
    %18 = tpu.matmul %15, %16, %cst_12 {dimension_numbers = #tpu.dot_dimension_numbers<[1], [0], [0], [1], [0, 0, 1, 1], [], []>} : vector<8x128xf32>, vector<128x128xf32>, vector<8x128xf32> -> vector<8x128xf32>
    %19 = vector.broadcast %17 : vector<1x128xf32> to vector<8x128xf32>
    %20 = arith.addf %18, %19 : vector<8x128xf32>
    %21 = arith.mulf %20, %20 : vector<8x128xf32>
    %cst_13 = arith.constant dense<0.000000e+00> : vector<8xf32>
    %22 = vector.multi_reduction <add>, %21, %cst_13 [1] : vector<8x128xf32> to vector<8xf32>
    %23 = vector.shape_cast %22 : vector<8xf32> to vector<8x1xf32>
    %cst_14 = arith.constant 1.000000e-24 : f32
    %24 = vector.broadcast %cst_14 : f32 to vector<8x1xf32>
    %25 = arith.maximumf %23, %24 : vector<8x1xf32>
    %26 = math.rsqrt %25 : vector<8x1xf32>
    %27 = vector.broadcast %26 : vector<8x1xf32> to vector<8x128xf32>
    %28 = arith.mulf %20, %27 : vector<8x128xf32>
    %cst_15 = arith.constant 0.000000e+00 : f32
    %29 = vector.broadcast %cst_15 : f32 to vector<8x128xf32>
    %30 = arith.maximumf %28, %29 : vector<8x128xf32>
    %c0_16 = arith.constant 0 : index
    %c0_17 = arith.constant 0 : index
    %31 = vector.load %arg5[%c0_16, %c0_17] : memref<128x128xf32, #tpu.memory_space<vmem>>, vector<128x128xf32>
    %c0_18 = arith.constant 0 : index
    %c0_19 = arith.constant 0 : index
    %32 = vector.load %arg6[%c0_18, %c0_19] : memref<1x128xf32, #tpu.memory_space<vmem>>, vector<1x128xf32>
    %cst_20 = arith.constant dense<0.000000e+00> : vector<8x128xf32>
    %33 = tpu.matmul %30, %31, %cst_20 {dimension_numbers = #tpu.dot_dimension_numbers<[1], [0], [0], [1], [0, 0, 1, 1], [], []>} : vector<8x128xf32>, vector<128x128xf32>, vector<8x128xf32> -> vector<8x128xf32>
    %34 = vector.broadcast %32 : vector<1x128xf32> to vector<8x128xf32>
    %35 = arith.addf %33, %34 : vector<8x128xf32>
    %c0_21 = arith.constant 0 : index
    %c0_22 = arith.constant 0 : index
    %36 = vector.load %arg7[%c0_21, %c0_22] : memref<8x128xf32, #tpu.memory_space<vmem>>, vector<8x128xf32>
    tpu.vector_store %arg7[%c0_21, %c0_22], %35 {strides = array<i32>} : memref<8x128xf32, #tpu.memory_space<vmem>>, vector<8x128xf32>,
    return
  }
}

</mosaic_0001>

<llo_original>
// kernel: decoder_y_forward.1
$region0: #{decoder_y_forward.1}
  #allocation0 [shape = 'u32[]', space=smem, size = 0x4, offset = 0x4, fixed_abs, tag = 'smem constant byte address 0x4 - core index']
  #allocation1 [shape = 'u32[144,128]{1,0:T(1,128)}', space=vmem, size = 0x12000, scoped, tag = 'internal scratch']
  %s0 = inlined_call_operand.vmem [shape: f32[8,128], index: 0, kind: input, shape index: {}]
  %s1 = inlined_call_operand.hbm [shape: f32[128,128], index: 1, kind: input, shape index: {}]
  %s2 = inlined_call_operand.vmem [shape: f32[1,128], index: 2, kind: input, shape index: {}]
  %s3 = inlined_call_operand.hbm [shape: f32[128,128], index: 3, kind: input, shape index: {}]
  %s4 = inlined_call_operand.vmem [shape: f32[1,128], index: 4, kind: input, shape index: {}]
  %s5 = inlined_call_operand.hbm [shape: f32[128,128], index: 5, kind: input, shape index: {}]
  %s6 = inlined_call_operand.vmem [shape: f32[1,128], index: 6, kind: input, shape index: {}]
  %s7 = inlined_call_operand.hbm [shape: f32[8,128], index: 7, kind: output, shape index: {}]
  %s8 = sld [smem:[#allocation0]]
  $region50: #{decoder_y_forward.1} parent=0
    _
  %s10 = ssub.s32 1, %s8
  %s11 = scalar_select 0, %s10, %s8
  $region1: #{decoder_y_forward.1} parent=0
    #allocation2 [shape = 'u8[65536]{0}', space=vmem, size = 0x10000, scoped, tag = 'input window, operand 1, single buffered']
    #allocation3 [shape = 's32[1]{0}', space=sflag, size = 0x4, scoped, tag = 'scoped memory for decoder_y_forward.1']
    #allocation4 [shape = 's32[1]{0}', space=sflag, size = 0x4, scoped, tag = 'scoped memory for decoder_y_forward.1']
    #allocation5 [shape = 'u8[65536]{0}', space=vmem, size = 0x10000, scoped, tag = 'input window, operand 3, single buffered']
    #allocation6 [shape = 's32[1]{0}', space=sflag, size = 0x4, scoped, tag = 'scoped memory for decoder_y_forward.1']
    #allocation7 [shape = 'u8[65536]{0}', space=vmem, size = 0x10000, scoped, tag = 'input window, operand 5, single buffered']
    #allocation8 [shape = 'u8[4096]{0}', space=vmem, size = 0x1000, scoped, tag = 'output window, operand 0, single buffered']
    %12 = vsyncpa [#allocation3], 0
    %13 = vsyncpa [#allocation6], 0
    %14 = vsyncpa [#allocation4], 0
    // Predicated region
    $region2: #{decoder_y_forward.1} parent=1 // pred_check
      _
    $region3: #{decoder_y_forward.1} parent=1 // pred_check_branch
      %16 = sbr.rel (0) target = $region5
    $region4: #{decoder_y_forward.1} parent=1 // pred_region
      _
    $region5: #{decoder_y_forward.1} parent=1 // pred_fallthru
      _
    // Predicated region
    $region6: #{decoder_y_forward.1} parent=1 // pred_check
      _
    $region7: #{decoder_y_forward.1} parent=1 // pred_check_branch
      %18 = sbr.rel (0) target = $region9
    $region8: #{decoder_y_forward.1} parent=1 // pred_region
      %s20 = ssub.s32 2048, 2048
      %21 = vsyncadd [#allocation3], %s20
      %s22 = sshll.u32 [#allocation2], 4
      %s23 = int_to_ptr.vmem [resolvable:$true] %s22
      %28 = dma.hbm_to_vmem [thread:$0]  %s1, 2048, %s23, [#allocation3], 128, 128, 8
    $region9: #{decoder_y_forward.1} parent=1 // pred_fallthru
      _
    // Predicated region
    $region10: #{decoder_y_forward.1} parent=1 // pred_check
      _
    $region11: #{decoder_y_forward.1} parent=1 // pred_check_branch
      %30 = sbr.rel (0) target = $region13
    $region12: #{decoder_y_forward.1} parent=1 // pred_region
      _
    $region13: #{decoder_y_forward.1} parent=1 // pred_fallthru
      _
    // Predicated region
    $region14: #{decoder_y_forward.1} parent=1 // pred_check
      _
    $region15: #{decoder_y_forward.1} parent=1 // pred_check_branch
      %32 = sbr.rel (0) target = $region17
    $region16: #{decoder_y_forward.1} parent=1 // pred_region
      %s34 = ssub.s32 2048, 2048
      %35 = vsyncadd [#allocation6], %s34
      %s36 = sshll.u32 [#allocation5], 4
      %s37 = int_to_ptr.vmem [resolvable:$true] %s36
      %42 = dma.hbm_to_vmem [thread:$0]  %s3, 2048, %s37, [#allocation6], 128, 128, 8
    $region17: #{decoder_y_forward.1} parent=1 // pred_fallthru
      _
    // Predicated region
    $region18: #{decoder_y_forward.1} parent=1 // pred_check
      _
    $region19: #{decoder_y_forward.1} parent=1 // pred_check_branch
      %44 = sbr.rel (0) target = $region21
    $region20: #{decoder_y_forward.1} parent=1 // pred_region
      _
    $region21: #{decoder_y_forward.1} parent=1 // pred_fallthru
      _
    // Predicated region
    $region22: #{decoder_y_forward.1} parent=1 // pred_check
      _
    $region23: #{decoder_y_forward.1} parent=1 // pred_check_branch
      %46 = sbr.rel (0) target = $region25
    $region24: #{decoder_y_forward.1} parent=1 // pred_region
      %s48 = ssub.s32 2048, 2048
      %49 = vsyncadd [#allocation6], %s48
      %s50 = sshll.u32 [#allocation7], 4
      %s51 = int_to_ptr.vmem [resolvable:$true] %s50
      %56 = dma.hbm_to_vmem [thread:$0]  %s5, 2048, %s51, [#allocation6], 128, 128, 8
    $region25: #{decoder_y_forward.1} parent=1 // pred_fallthru
      _
    // Predicated region
    $region26: #{decoder_y_forward.1} parent=1 // pred_check
      _
    $region27: #{decoder_y_forward.1} parent=1 // pred_check_branch
      %58 = sbr.rel (0) target = $region29
    $region28: #{decoder_y_forward.1} parent=1 // pred_region
      _
    $region29: #{decoder_y_forward.1} parent=1 // pred_fallthru
      _
    // Predicated region
    $region30: #{decoder_y_forward.1} parent=1 // pred_check
      _
    $region31: #{decoder_y_forward.1} parent=1 // pred_check_branch
      %60 = sbr.rel (0) target = $region33
    $region32: #{decoder_y_forward.1} parent=1 // pred_region
      %61 = dma.done [#allocation3], 2048
    $region33: #{decoder_y_forward.1} parent=1 // pred_fallthru
      _
    // Predicated region
    $region34: #{decoder_y_forward.1} parent=1 // pred_check
      _
    $region35: #{decoder_y_forward.1} parent=1 // pred_check_branch
      %63 = sbr.rel (0) target = $region37
    $region36: #{decoder_y_forward.1} parent=1 // pred_region
      %64 = dma.done [#allocation6], 2048
    $region37: #{decoder_y_forward.1} parent=1 // pred_fallthru
      _
    // Predicated region
    $region38: #{decoder_y_forward.1} parent=1 // pred_check
      _
    $region39: #{decoder_y_forward.1} parent=1 // pred_check_branch
      %66 = sbr.rel (0) target = $region41
    $region40: #{decoder_y_forward.1} parent=1 // pred_region
      %67 = dma.done [#allocation6], 2048
    $region41: #{decoder_y_forward.1} parent=1 // pred_fallthru
      _
    %v68 = vld [vmem:[%s0] sm:$0xff]
    %v69 = vld [vmem:[#allocation2] sm:$0xff]
    %v70 = vld [vmem:[#allocation2 + $0x8] sm:$0xff]
    %v71 = vld [vmem:[#allocation2 + $0x10] sm:$0xff]
    %v72 = vld [vmem:[#allocation2 + $0x18] sm:$0xff]
    %v73 = vld [vmem:[#allocation2 + $0x20] sm:$0xff]
    %v74 = vld [vmem:[#allocation2 + $0x28] sm:$0xff]
    %v75 = vld [vmem:[#allocation2 + $0x30] sm:$0xff]
    %v76 = vld [vmem:[#allocation2 + $0x38] sm:$0xff]
    %v77 = vld [vmem:[#allocation2 + $0x40] sm:$0xff]
    %v78 = vld [vmem:[#allocation2 + $0x48] sm:$0xff]
    %v79 = vld [vmem:[#allocation2 + $0x50] sm:$0xff]
    %v80 = vld [vmem:[#allocation2 + $0x58] sm:$0xff]
    %v81 = vld [vmem:[#allocation2 + $0x60] sm:$0xff]
    %v82 = vld [vmem:[#allocation2 + $0x68] sm:$0xff]
    %v83 = vld [vmem:[#allocation2 + $0x70] sm:$0xff]
    %v84 = vld [vmem:[#allocation2 + $0x78] sm:$0xff]
    %v85 = vld [vmem:[%s2] sm:$0x1]
    %v87 = vlaneseq
    %v88 = vshrl.u32 %v87, 7
    %v89 = vsub.s32 0, %v88
    %v90 = vrot.slane %v85, %v89
    %92 = vmatprep.subr.mxu0 0.0
    %93 = vmatpush1.msra.mxu0 %v69
    %94 = vmatprep.subr.mxu0 0.0
    %95 = vmatpush1.msra.mxu0 %v70
    %96 = vmatprep.subr.mxu0 0.0
    %97 = vmatpush1.msra.mxu0 %v71
    %98 = vmatprep.subr.mxu0 0.0
    %99 = vmatpush1.msra.mxu0 %v72
    %100 = vmatprep.subr.mxu0 0.0
    %101 = vmatpush1.msra.mxu0 %v73
    %102 = vmatprep.subr.mxu0 0.0
    %103 = vmatpush1.msra.mxu0 %v74
    %104 = vmatprep.subr.mxu0 0.0
    %105 = vmatpush1.msra.mxu0 %v75
    %106 = vmatprep.subr.mxu0 0.0
    %107 = vmatpush1.msra.mxu0 %v76
    %108 = vmatprep.subr.mxu0 0.0
    %109 = vmatpush1.msra.mxu0 %v77
    %110 = vmatprep.subr.mxu0 0.0
    %111 = vmatpush1.msra.mxu0 %v78
    %112 = vmatprep.subr.mxu0 0.0
    %113 = vmatpush1.msra.mxu0 %v79
    %114 = vmatprep.subr.mxu0 0.0
    %115 = vmatpush1.msra.mxu0 %v80
    %116 = vmatprep.subr.mxu0 0.0
    %117 = vmatpush1.msra.mxu0 %v81
    %118 = vmatprep.subr.mxu0 0.0
    %119 = vmatpush1.msra.mxu0 %v82
    %120 = vmatprep.subr.mxu0 0.0
    %121 = vmatpush1.msra.mxu0 %v83
    %122 = vmatprep.subr.mxu0 0.0
    %123 = vmatpush1.msra.mxu0 %v84
    %124 = vmatprep.subr.mxu0 0.0
    %125 = vmatpush1.msra.mxu0 0.0
    %126 = vmatprep.subr.mxu0 0.0
    %127 = vmatpush1.msra.mxu0 0.0
    %128 = vmatprep.subr.mxu0 0.0
    %129 = vmatpush1.msra.mxu0 0.0
    %130 = vmatprep.subr.mxu0 0.0
    %131 = vmatpush1.msra.mxu0 0.0
    %132 = vmatprep.subr.mxu0 0.0
    %133 = vmatpush1.msra.mxu0 0.0
    %134 = vmatprep.subr.mxu0 0.0
    %135 = vmatpush1.msra.mxu0 0.0
    %136 = vmatprep.subr.mxu0 0.0
    %137 = vmatpush1.msra.mxu0 0.0
    %138 = vmatprep.subr.mxu0 0.0
    %139 = vmatpush1.msra.mxu0 0.0
    %140 = vmatprep.subr.mxu0 0.0
    %141 = vmatpush1.msra.mxu0 0.0
    %142 = vmatprep.subr.mxu0 0.0
    %143 = vmatpush1.msra.mxu0 0.0
    %144 = vmatprep.subr.mxu0 0.0
    %145 = vmatpush1.msra.mxu0 0.0
    %146 = vmatprep.subr.mxu0 0.0
    %147 = vmatpush1.msra.mxu0 0.0
    %148 = vmatprep.subr.mxu0 0.0
    %149 = vmatpush1.msra.mxu0 0.0
    %150 = vmatprep.subr.mxu0 0.0
    %151 = vmatpush1.msra.mxu0 0.0
    %152 = vmatprep.subr.mxu0 0.0
    %153 = vmatpush1.msra.mxu0 0.0
    %154 = vmatprep.subr.mxu0 0.0
    %155 = vmatpush1.msra.mxu0 0.0
    %156 = vmatprep.mubr.f32.mxu0 0.0
    %157 = vmatmul.mubr.f32.gmra.mrb[0].mxu0 %v68
    %v158 = vpop.f32.mrb[0].mxu0
    %v159 = vadd.f32 %v90, %v158
    %v160 = vpop.f32.mrb[0].mxu0
    %161 = vdwg.mxu0
    %v162 = vmul.f32 %v159, %v159
    %163 = vadd.xlane.f32.xlu0 %v162
    %v164 = vpop.xlane.xlu0 %163
    %v165 = vmax.f32 %v164, 1e-24
    %v166 = vrsqrt.pop %v165
    %v167 = vmul.f32 %v159, %v166
    %v168 = vmax.f32 %v167, 0.0
    %v169 = vld [vmem:[#allocation5] sm:$0xff]
    %v170 = vld [vmem:[#allocation5 + $0x8] sm:$0xff]
    %v171 = vld [vmem:[#allocation5 + $0x10] sm:$0xff]
    %v172 = vld [vmem:[#allocation5 + $0x18] sm:$0xff]
    %v173 = vld [vmem:[#allocation5 + $0x20] sm:$0xff]
    %v174 = vld [vmem:[#allocation5 + $0x28] sm:$0xff]
    %v175 = vld [vmem:[#allocation5 + $0x30] sm:$0xff]
    %v176 = vld [vmem:[#allocation5 + $0x38] sm:$0xff]
    %v177 = vld [vmem:[#allocation5 + $0x40] sm:$0xff]
    %v178 = vld [vmem:[#allocation5 + $0x48] sm:$0xff]
    %v179 = vld [vmem:[#allocation5 + $0x50] sm:$0xff]
    %v180 = vld [vmem:[#allocation5 + $0x58] sm:$0xff]
    %v181 = vld [vmem:[#allocation5 + $0x60] sm:$0xff]
    %v182 = vld [vmem:[#allocation5 + $0x68] sm:$0xff]
    %v183 = vld [vmem:[#allocation5 + $0x70] sm:$0xff]
    %v184 = vld [vmem:[#allocation5 + $0x78] sm:$0xff]
    %v185 = vld [vmem:[%s4] sm:$0x1]
    %v187 = vlaneseq
    %v188 = vshrl.u32 %v187, 7
    %v189 = vsub.s32 0, %v188
    %v190 = vrot.slane %v185, %v189
    %192 = vmatprep.subr.mxu0 0.0
    %193 = vmatpush1.msra.mxu0 %v169
    %194 = vmatprep.subr.mxu0 0.0
    %195 = vmatpush1.msra.mxu0 %v170
    %196 = vmatprep.subr.mxu0 0.0
    %197 = vmatpush1.msra.mxu0 %v171
    %198 = vmatprep.subr.mxu0 0.0
    %199 = vmatpush1.msra.mxu0 %v172
    %200 = vmatprep.subr.mxu0 0.0
    %201 = vmatpush1.msra.mxu0 %v173
    %202 = vmatprep.subr.mxu0 0.0
    %203 = vmatpush1.msra.mxu0 %v174
    %204 = vmatprep.subr.mxu0 0.0
    %205 = vmatpush1.msra.mxu0 %v175
    %206 = vmatprep.subr.mxu0 0.0
    %207 = vmatpush1.msra.mxu0 %v176
    %208 = vmatprep.subr.mxu0 0.0
    %209 = vmatpush1.msra.mxu0 %v177
    %210 = vmatprep.subr.mxu0 0.0
    %211 = vmatpush1.msra.mxu0 %v178
    %212 = vmatprep.subr.mxu0 0.0
    %213 = vmatpush1.msra.mxu0 %v179
    %214 = vmatprep.subr.mxu0 0.0
    %215 = vmatpush1.msra.mxu0 %v180
    %216 = vmatprep.subr.mxu0 0.0
    %217 = vmatpush1.msra.mxu0 %v181
    %218 = vmatprep.subr.mxu0 0.0
    %219 = vmatpush1.msra.mxu0 %v182
    %220 = vmatprep.subr.mxu0 0.0
    %221 = vmatpush1.msra.mxu0 %v183
    %222 = vmatprep.subr.mxu0 0.0
    %223 = vmatpush1.msra.mxu0 %v184
    %224 = vmatprep.subr.mxu0 0.0
    %225 = vmatpush1.msra.mxu0 0.0
    %226 = vmatprep.subr.mxu0 0.0
    %227 = vmatpush1.msra.mxu0 0.0
    %228 = vmatprep.subr.mxu0 0.0
    %229 = vmatpush1.msra.mxu0 0.0
    %230 = vmatprep.subr.mxu0 0.0
    %231 = vmatpush1.msra.mxu0 0.0
    %232 = vmatprep.subr.mxu0 0.0
    %233 = vmatpush1.msra.mxu0 0.0
    %234 = vmatprep.subr.mxu0 0.0
    %235 = vmatpush1.msra.mxu0 0.0
    %236 = vmatprep.subr.mxu0 0.0
    %237 = vmatpush1.msra.mxu0 0.0
    %238 = vmatprep.subr.mxu0 0.0
    %239 = vmatpush1.msra.mxu0 0.0
    %240 = vmatprep.subr.mxu0 0.0
    %241 = vmatpush1.msra.mxu0 0.0
    %242 = vmatprep.subr.mxu0 0.0
    %243 = vmatpush1.msra.mxu0 0.0
    %244 = vmatprep.subr.mxu0 0.0
    %245 = vmatpush1.msra.mxu0 0.0
    %246 = vmatprep.subr.mxu0 0.0
    %247 = vmatpush1.msra.mxu0 0.0
    %248 = vmatprep.subr.mxu0 0.0
    %249 = vmatpush1.msra.mxu0 0.0
    %250 = vmatprep.subr.mxu0 0.0
    %251 = vmatpush1.msra.mxu0 0.0
    %252 = vmatprep.subr.mxu0 0.0
    %253 = vmatpush1.msra.mxu0 0.0
    %254 = vmatprep.subr.mxu0 0.0
    %255 = vmatpush1.msra.mxu0 0.0
    %256 = vmatprep.mubr.f32.mxu0 0.0
    %257 = vmatmul.mubr.f32.gmra.mrb[0].mxu0 %v168
    %v258 = vpop.f32.mrb[0].mxu0
    %v259 = vadd.f32 %v190, %v258
    %v260 = vpop.f32.mrb[0].mxu0
    %261 = vdwg.mxu0
    %v262 = vmul.f32 %v259, %v259
    %263 = vadd.xlane.f32.xlu0 %v262
    %v264 = vpop.xlane.xlu0 %263
    %v265 = vmax.f32 %v264, 1e-24
    %v266 = vrsqrt.pop %v265
    %v267 = vmul.f32 %v259, %v266
    %v268 = vmax.f32 %v267, 0.0
    %v269 = vld [vmem:[#allocation7] sm:$0xff]
    %v270 = vld [vmem:[#allocation7 + $0x8] sm:$0xff]
    %v271 = vld [vmem:[#allocation7 + $0x10] sm:$0xff]
    %v272 = vld [vmem:[#allocation7 + $0x18] sm:$0xff]
    %v273 = vld [vmem:[#allocation7 + $0x20] sm:$0xff]
    %v274 = vld [vmem:[#allocation7 + $0x28] sm:$0xff]
    %v275 = vld [vmem:[#allocation7 + $0x30] sm:$0xff]
    %v276 = vld [vmem:[#allocation7 + $0x38] sm:$0xff]
    %v277 = vld [vmem:[#allocation7 + $0x40] sm:$0xff]
    %v278 = vld [vmem:[#allocation7 + $0x48] sm:$0xff]
    %v279 = vld [vmem:[#allocation7 + $0x50] sm:$0xff]
    %v280 = vld [vmem:[#allocation7 + $0x58] sm:$0xff]
    %v281 = vld [vmem:[#allocation7 + $0x60] sm:$0xff]
    %v282 = vld [vmem:[#allocation7 + $0x68] sm:$0xff]
    %v283 = vld [vmem:[#allocation7 + $0x70] sm:$0xff]
    %v284 = vld [vmem:[#allocation7 + $0x78] sm:$0xff]
    %v285 = vld [vmem:[%s6] sm:$0x1]
    %v287 = vlaneseq
    %v288 = vshrl.u32 %v287, 7
    %v289 = vsub.s32 0, %v288
    %v290 = vrot.slane %v285, %v289
    %292 = vmatprep.subr.mxu0 0.0
    %293 = vmatpush1.msra.mxu0 %v269
    %294 = vmatprep.subr.mxu0 0.0
    %295 = vmatpush1.msra.mxu0 %v270
    %296 = vmatprep.subr.mxu0 0.0
    %297 = vmatpush1.msra.mxu0 %v271
    %298 = vmatprep.subr.mxu0 0.0
    %299 = vmatpush1.msra.mxu0 %v272
    %300 = vmatprep.subr.mxu0 0.0
    %301 = vmatpush1.msra.mxu0 %v273
    %302 = vmatprep.subr.mxu0 0.0
    %303 = vmatpush1.msra.mxu0 %v274
    %304 = vmatprep.subr.mxu0 0.0
    %305 = vmatpush1.msra.mxu0 %v275
    %306 = vmatprep.subr.mxu0 0.0
    %307 = vmatpush1.msra.mxu0 %v276
    %308 = vmatprep.subr.mxu0 0.0
    %309 = vmatpush1.msra.mxu0 %v277
    %310 = vmatprep.subr.mxu0 0.0
    %311 = vmatpush1.msra.mxu0 %v278
    %312 = vmatprep.subr.mxu0 0.0
    %313 = vmatpush1.msra.mxu0 %v279
    %314 = vmatprep.subr.mxu0 0.0
    %315 = vmatpush1.msra.mxu0 %v280
    %316 = vmatprep.subr.mxu0 0.0
    %317 = vmatpush1.msra.mxu0 %v281
    %318 = vmatprep.subr.mxu0 0.0
    %319 = vmatpush1.msra.mxu0 %v282
    %320 = vmatprep.subr.mxu0 0.0
    %321 = vmatpush1.msra.mxu0 %v283
    %322 = vmatprep.subr.mxu0 0.0
    %323 = vmatpush1.msra.mxu0 %v284
    %324 = vmatprep.subr.mxu0 0.0
    %325 = vmatpush1.msra.mxu0 0.0
    %326 = vmatprep.subr.mxu0 0.0
    %327 = vmatpush1.msra.mxu0 0.0
    %328 = vmatprep.subr.mxu0 0.0
    %329 = vmatpush1.msra.mxu0 0.0
    %330 = vmatprep.subr.mxu0 0.0
    %331 = vmatpush1.msra.mxu0 0.0
    %332 = vmatprep.subr.mxu0 0.0
    %333 = vmatpush1.msra.mxu0 0.0
    %334 = vmatprep.subr.mxu0 0.0
    %335 = vmatpush1.msra.mxu0 0.0
    %336 = vmatprep.subr.mxu0 0.0
    %337 = vmatpush1.msra.mxu0 0.0
    %338 = vmatprep.subr.mxu0 0.0
    %339 = vmatpush1.msra.mxu0 0.0
    %340 = vmatprep.subr.mxu0 0.0
    %341 = vmatpush1.msra.mxu0 0.0
    %342 = vmatprep.subr.mxu0 0.0
    %343 = vmatpush1.msra.mxu0 0.0
    %344 = vmatprep.subr.mxu0 0.0
    %345 = vmatpush1.msra.mxu0 0.0
    %346 = vmatprep.subr.mxu0 0.0
    %347 = vmatpush1.msra.mxu0 0.0
    %348 = vmatprep.subr.mxu0 0.0
    %349 = vmatpush1.msra.mxu0 0.0
    %350 = vmatprep.subr.mxu0 0.0
    %351 = vmatpush1.msra.mxu0 0.0
    %352 = vmatprep.subr.mxu0 0.0
    %353 = vmatpush1.msra.mxu0 0.0
    %354 = vmatprep.subr.mxu0 0.0
    %355 = vmatpush1.msra.mxu0 0.0
    %356 = vmatprep.mubr.f32.mxu0 0.0
    %357 = vmatmul.mubr.f32.gmra.mrb[0].mxu0 %v268
    %v358 = vpop.f32.mrb[0].mxu0
    %v359 = vadd.f32 %v290, %v358
    %v360 = vpop.f32.mrb[0].mxu0
    %361 = vdwg.mxu0
    %362 = vst [vmem:[#allocation8] sm:$0xff] %v359
    // Predicated region
    $region42: #{decoder_y_forward.1} parent=1 // pred_check
      _
    $region43: #{decoder_y_forward.1} parent=1 // pred_check_branch
      %364 = sbr.rel (0) target = $region45
    $region44: #{decoder_y_forward.1} parent=1 // pred_region
      %s366 = ssub.s32 128, 128
      %367 = vsyncadd [#allocation4], %s366
      %s369 = sshll.u32 [#allocation8], 4
      %s370 = int_to_ptr.vmem [resolvable:$true] %s369
      %372 = dma.vmem_to_hbm [thread:$0]  %s370, 128, %s7, [#allocation4]
    $region45: #{decoder_y_forward.1} parent=1 // pred_fallthru
      _
    // Predicated region
    $region46: #{decoder_y_forward.1} parent=1 // pred_check
      _
    $region47: #{decoder_y_forward.1} parent=1 // pred_check_branch
      %374 = sbr.rel (0) target = $region49
    $region48: #{decoder_y_forward.1} parent=1 // pred_region
      %375 = dma.done [#allocation4], 128
    $region49: #{decoder_y_forward.1} parent=1 // pred_fallthru
      _
    %376 = vsyncpa [#allocation3], 1
    %377 = vsyncpa [#allocation6], 1
    %378 = vsyncpa [#allocation4], 1

</llo_original>
